<compile_context>
chip_gen: v6e
topology: v6e:2x2x1
jax: 0.10.0
libtpu: 0.0.40
codegen_flags: <defaults>
</compile_context>

<pallas_src>
import functools
import math

import jax
import jax.numpy as jnp
from jax.experimental import pallas as pl
from jax.experimental.pallas import tpu as pltpu


_INV_SQRT2 = 1.0 / math.sqrt(2.0)


def _erf(x):
    # Abramowitz & Stegun 7.1.26 rational approximation of erf, |err| <= 1.5e-7,
    # built only from ops guaranteed to lower on Mosaic (abs/where/mul/add/div/
    # exp) so the exact (erf-based) BERT gelu compiles on every TPU generation.
    # NOTE: pl.reciprocal(approx=True) for the 1/(1+p*z) term would move the
    # divide onto the EUP, but its ~1e-3 relative error breaks the 1e-4
    # tolerance vs. the exact-erf reference, so the accurate divide is kept.
    p = 0.3275911
    a1, a2, a3, a4, a5 = (0.254829592, -0.284496736, 1.421413741,
                          -1.453152027, 1.061405429)
    sign = jnp.where(x >= 0.0, 1.0, -1.0)
    z = jnp.abs(x)
    t = 1.0 / (1.0 + p * z)
    poly = t * (a1 + t * (a2 + t * (a3 + t * (a4 + t * a5))))
    return sign * (1.0 - poly * jnp.exp(-z * z))        # exp -> EUP slot


def transform_kernel(x_ref, wt_ref, p_ref, o_ref, *, eps):
    # x_ref : [TM, H] token tile
    # wt_ref: [H, H]  pre-transposed weight (in_features, out_features) == [K, N]
    # p_ref : [3, H]  f32 packed (bias, gamma, beta), grid-resident
    # o_ref : [TM, H]
    x = x_ref[...]

    # Dense: y = x @ W^T + b, with W^T already materialized in the wrapper ->
    # canonical [K, N] MXU feed, f32 accumulation.
    y = jnp.dot(x, wt_ref[...], preferred_element_type=jnp.float32)
    y = y + p_ref[0:1, :]

    # Exact (erf-based) BERT gelu: y * 0.5 * (1 + erf(y / sqrt(2))).
    y = y * 0.5 * (1.0 + _erf(y * _INV_SQRT2))

    # LayerNorm over the hidden dim (biased variance, like torch.nn.LayerNorm).
    mean = jnp.mean(y, axis=-1, keepdims=True)
    centered = y - mean
    var = jnp.mean(centered * centered, axis=-1, keepdims=True)
    out = centered * jax.lax.rsqrt(var + eps) * p_ref[1:2, :] + p_ref[2:3, :]

    o_ref[...] = out.astype(o_ref.dtype)


def _choose_tile_and_vmem(M, H, x_itemsize, out_itemsize, tile_m):
    """Pick a token-tile size and matching scoped-VMEM limit from a footprint estimate."""
    # Per-row cost: double-buffered input + output tiles plus ~3 live f32 [TM,H]
    # intermediates in the epilogue.
    per_row = 2 * H * x_itemsize + 2 * H * out_itemsize + 3 * H * 4
    # Resident operands (conservatively assume double-buffered, in case the
    # Buffered(1) request is not honored).
    fixed = 2 * H * H * x_itemsize + 2 * 3 * H * 4
    if tile_m >= M:
        tm = M                       # single block == full dim -> always legal
    else:
        budget = 28 * 1024 * 1024    # fits 32 MiB default scoped / v7x's 64 MiB physical
        tm_fit = max(8, (int(max(budget - fixed, 0) // per_row) // 8) * 8)
        tm = max(8, (min(tile_m, tm_fit) // 8) * 8)
    est = fixed + tm * per_row
    vmem_limit = int(min(48 * 1024 * 1024, max(32 * 1024 * 1024, 2 * est)))
    return tm, vmem_limit


def bert_prediction_head_transform(hidden_states, weight, bias, gamma, beta,
                                   *, eps=1e-12, tile_m=512):
    """hidden_states: [..., H]; weight: [H, H] (torch layout); bias/gamma/beta: [H]."""
    H = hidden_states.shape[-1]
    orig_shape = hidden_states.shape
    x = hidden_states.reshape(-1, H)
    M = x.shape[0]

    # One-time wrapper-side prep (amortized over the whole grid, weight block is
    # resident): transpose the weight to a canonical [K, N] RHS, and pack the
    # three small vectors into one f32 operand.
    w_t = jnp.transpose(weight)
    params = jnp.stack([bias.astype(jnp.float32),
                        gamma.astype(jnp.float32),
                        beta.astype(jnp.float32)], axis=0)      # (3, H) f32

    tm, vmem_limit = _choose_tile_and_vmem(
        M, H, x.dtype.itemsize, hidden_states.dtype.itemsize, tile_m)
    grid = (pl.cdiv(M, tm),)   # ragged last block handled by Pallas: no pad/slice

    cost = pl.CostEstimate(
        flops=2 * M * H * H + 30 * M * H,
        transcendentals=M * H,
        bytes_accessed=(M * H * (x.dtype.itemsize + hidden_states.dtype.itemsize)
                        + H * H * w_t.dtype.itemsize + 3 * H * 4),
    )

    def run(single_buffer_resident):
        resident_kw = ({"pipeline_mode": pl.Buffered(1)}
                       if single_buffer_resident else {})
        return pl.pallas_call(
            functools.partial(transform_kernel, eps=float(eps)),
            out_shape=jax.ShapeDtypeStruct((M, H), hidden_states.dtype),
            grid=grid,
            in_specs=[
                # token tile: the only operand re-DMA'd every grid step
                pl.BlockSpec((tm, H), lambda i: (i, 0)),
                # resident HxH weight (fetched once; single-buffered if allowed)
                pl.BlockSpec((H, H), lambda i: (0, 0), **resident_kw),
                # resident packed (bias, gamma, beta)
                pl.BlockSpec((3, H), lambda i: (0, 0), **resident_kw),
            ],
            out_specs=pl.BlockSpec((tm, H), lambda i: (i, 0)),
            compiler_params=pltpu.CompilerParams(
                # Independent token tiles -> shard across v7x's 2 TensorCores.
                dimension_semantics=("parallel",),
                vmem_limit_bytes=vmem_limit,
            ),
            cost_estimate=cost,
        )(x, w_t, params)

    try:
        out = run(True)      # single-buffer the grid-invariant operands
    except Exception:        # fallback: JAX version rejects Buffered(1)
        out = run(False)

    return out.reshape(orig_shape)


if __name__ == "__main__":
    # Small BERT-like shapes: batch=2, seq=8, hidden=32.
    B, S, H = 2, 8, 32
    eps = 1e-12
    key = jax.random.PRNGKey(0)
    k_hs, k_w, k_b, k_g, k_be = jax.random.split(key, 5)

    hidden_states = jax.random.normal(k_hs, (B, S, H), dtype=jnp.float32)
    weight = jax.random.normal(k_w, (H, H), dtype=jnp.float32) * 0.02
    bias = jax.random.normal(k_b, (H,), dtype=jnp.float32) * 0.02
    gamma = 1.0 + 0.1 * jax.random.normal(k_g, (H,), dtype=jnp.float32)
    beta = 0.1 * jax.random.normal(k_be, (H,), dtype=jnp.float32)

    out = bert_prediction_head_transform(hidden_states, weight, bias, gamma,
                                         beta, eps=eps)
    out = jax.block_until_ready(out)

    # Pure-JAX reference (same math as the PyTorch module).
    y = hidden_states @ weight.T + bias
    y = y * 0.5 * (1.0 + jax.scipy.special.erf(y / math.sqrt(2.0)))
    mean = y.mean(axis=-1, keepdims=True)
    var = jnp.mean((y - mean) ** 2, axis=-1, keepdims=True)
    ref = (y - mean) / jnp.sqrt(var + eps) * gamma + beta

    assert out.shape == hidden_states.shape
    err = float(jnp.max(jnp.abs(out - ref)))
    assert jnp.allclose(out, ref, atol=1e-4, rtol=1e-4), err

    print("KERNEL_OK")
</pallas_src>

<mosaic_0001>
module attributes {stable_mosaic.version = 11 : i64} {
  func.func @transform_kernel(%arg0: i32, %arg1: memref<16x32xf32, #tpu.memory_space<vmem>>, %arg2: memref<32x32xf32, #tpu.memory_space<vmem>>, %arg3: memref<3x32xf32, #tpu.memory_space<vmem>>, %arg4: memref<16x32xf32, #tpu.memory_space<vmem>>) attributes {dimension_semantics = [#tpu.dimension_semantics<parallel>], iteration_bounds = array<i64: 1>, scalar_prefetch = 0 : i64, scratch_operands = 0 : i64, tpu.core_type = #tpu.core_type<tc>, window_params = [{transform_indices = @transform_0, window_bounds = array<i64: 16, 32>}, {pipeline_mode = #tpu.pipeline_mode<synchronous>, transform_indices = @transform_1, window_bounds = array<i64: 32, 32>}, {pipeline_mode = #tpu.pipeline_mode<synchronous>, transform_indices = @transform_2, window_bounds = array<i64: 3, 32>}, {transform_indices = @transform_3, window_bounds = array<i64: 16, 32>}]} {
    %c0 = arith.constant 0 : index
    %c0_0 = arith.constant 0 : index
    %0 = vector.load %arg1[%c0, %c0_0] : memref<16x32xf32, #tpu.memory_space<vmem>>, vector<16x32xf32>
    %c0_1 = arith.constant 0 : index
    %c0_2 = arith.constant 0 : index
    %1 = vector.load %arg2[%c0_1, %c0_2] : memref<32x32xf32, #tpu.memory_space<vmem>>, vector<32x32xf32>
    %cst = arith.constant dense<0.000000e+00> : vector<16x32xf32>
    %2 = tpu.matmul %0, %1, %cst {dimension_numbers = #tpu.dot_dimension_numbers<[1], [0], [0], [1], [0, 0, 1, 1], [], []>} : vector<16x32xf32>, vector<32x32xf32>, vector<16x32xf32> -> vector<16x32xf32>
    %c0_3 = arith.constant 0 : index
    %c0_4 = arith.constant 0 : index
    %3 = vector.load %arg3[%c0_3, %c0_4] : memref<3x32xf32, #tpu.memory_space<vmem>>, vector<1x32xf32>
    %4 = vector.broadcast %3 : vector<1x32xf32> to vector<16x32xf32>
    %5 = arith.addf %2, %4 : vector<16x32xf32>
    %cst_5 = arith.constant 5.000000e-01 : f32
    %6 = vector.broadcast %cst_5 : f32 to vector<16x32xf32>
    %7 = arith.mulf %5, %6 : vector<16x32xf32>
    %cst_6 = arith.constant 0.707106769 : f32
    %8 = vector.broadcast %cst_6 : f32 to vector<16x32xf32>
    %9 = arith.mulf %5, %8 : vector<16x32xf32>
    %cst_7 = arith.constant 0.000000e+00 : f32
    %10 = vector.broadcast %cst_7 : f32 to vector<16x32xf32>
    %11 = arith.cmpf oge, %9, %10 : vector<16x32xf32>
    %cst_8 = arith.constant 1.000000e+00 : f32
    %cst_9 = arith.constant -1.000000e+00 : f32
    %12 = vector.broadcast %cst_8 : f32 to vector<16x32xf32>
    %13 = vector.broadcast %cst_9 : f32 to vector<16x32xf32>
    %14 = arith.select %11, %12, %13 : vector<16x32xi1>, vector<16x32xf32>
    %15 = math.absf %9 : vector<16x32xf32>
    %cst_10 = arith.constant 0.327591091 : f32
    %16 = vector.broadcast %cst_10 : f32 to vector<16x32xf32>
    %17 = arith.mulf %16, %15 : vector<16x32xf32>
    %cst_11 = arith.constant 1.000000e+00 : f32
    %18 = vector.broadcast %cst_11 : f32 to vector<16x32xf32>
    %19 = arith.addf %18, %17 : vector<16x32xf32>
    %cst_12 = arith.constant 1.000000e+00 : f32
    %20 = vector.broadcast %cst_12 : f32 to vector<16x32xf32>
    %21 = arith.divf %20, %19 : vector<16x32xf32>
    %cst_13 = arith.constant 1.06140542 : f32
    %22 = vector.broadcast %cst_13 : f32 to vector<16x32xf32>
    %23 = arith.mulf %21, %22 : vector<16x32xf32>
    %cst_14 = arith.constant -1.45315206 : f32
    %24 = vector.broadcast %cst_14 : f32 to vector<16x32xf32>
    %25 = arith.addf %24, %23 : vector<16x32xf32>
    %26 = arith.mulf %21, %25 : vector<16x32xf32>
    %cst_15 = arith.constant 1.42141378 : f32
    %27 = vector.broadcast %cst_15 : f32 to vector<16x32xf32>
    %28 = arith.addf %27, %26 : vector<16x32xf32>
    %29 = arith.mulf %21, %28 : vector<16x32xf32>
    %cst_16 = arith.constant -0.284496725 : f32
    %30 = vector.broadcast %cst_16 : f32 to vector<16x32xf32>
    %31 = arith.addf %30, %29 : vector<16x32xf32>
    %32 = arith.mulf %21, %31 : vector<16x32xf32>
    %cst_17 = arith.constant 0.254829586 : f32
    %33 = vector.broadcast %cst_17 : f32 to vector<16x32xf32>
    %34 = arith.addf %33, %32 : vector<16x32xf32>
    %35 = arith.mulf %21, %34 : vector<16x32xf32>
    %cst_18 = arith.constant 0.000000e+00 : f32
    %36 = vector.broadcast %cst_18 : f32 to vector<16x32xf32>
    %37 = arith.subf %36, %15 : vector<16x32xf32>
    %38 = arith.mulf %37, %15 : vector<16x32xf32>
    %39 = math.exp %38 : vector<16x32xf32>
    %40 = arith.mulf %35, %39 : vector<16x32xf32>
    %cst_19 = arith.constant 1.000000e+00 : f32
    %41 = vector.broadcast %cst_19 : f32 to vector<16x32xf32>
    %42 = arith.subf %41, %40 : vector<16x32xf32>
    %43 = arith.mulf %14, %42 : vector<16x32xf32>
    %cst_20 = arith.constant 1.000000e+00 : f32
    %44 = vector.broadcast %cst_20 : f32 to vector<16x32xf32>
    %45 = arith.addf %44, %43 : vector<16x32xf32>
    %46 = arith.mulf %7, %45 : vector<16x32xf32>
    %cst_21 = arith.constant dense<0.000000e+00> : vector<16xf32>
    %47 = vector.multi_reduction <add>, %46, %cst_21 [1] : vector<16x32xf32> to vector<16xf32>
    %48 = vector.shape_cast %47 : vector<16xf32> to vector<16x1xf32>
    %cst_22 = arith.constant 3.200000e+01 : f32
    %49 = vector.broadcast %cst_22 : f32 to vector<16x1xf32>
    %50 = arith.divf %48, %49 : vector<16x1xf32>
    %51 = vector.broadcast %50 : vector<16x1xf32> to vector<16x32xf32>
    %52 = arith.subf %46, %51 : vector<16x32xf32>
    %53 = arith.mulf %52, %52 : vector<16x32xf32>
    %cst_23 = arith.constant dense<0.000000e+00> : vector<16xf32>
    %54 = vector.multi_reduction <add>, %53, %cst_23 [1] : vector<16x32xf32> to vector<16xf32>
    %55 = vector.shape_cast %54 : vector<16xf32> to vector<16x1xf32>
    %cst_24 = arith.constant 3.200000e+01 : f32
    %56 = vector.broadcast %cst_24 : f32 to vector<16x1xf32>
    %57 = arith.divf %55, %56 : vector<16x1xf32>
    %cst_25 = arith.constant 9.99999996E-13 : f32
    %58 = vector.broadcast %cst_25 : f32 to vector<16x1xf32>
    %59 = arith.addf %57, %58 : vector<16x1xf32>
    %60 = math.rsqrt %59 : vector<16x1xf32>
    %61 = vector.broadcast %60 : vector<16x1xf32> to vector<16x32xf32>
    %62 = arith.mulf %52, %61 : vector<16x32xf32>
    %c1 = arith.constant 1 : index
    %c0_26 = arith.constant 0 : index
    %63 = vector.load %arg3[%c1, %c0_26] : memref<3x32xf32, #tpu.memory_space<vmem>>, vector<1x32xf32>
    %64 = vector.broadcast %63 : vector<1x32xf32> to vector<16x32xf32>
    %65 = arith.mulf %62, %64 : vector<16x32xf32>
    %c2 = arith.constant 2 : index
    %c0_27 = arith.constant 0 : index
    %66 = vector.load %arg3[%c2, %c0_27] : memref<3x32xf32, #tpu.memory_space<vmem>>, vector<1x32xf32>
    %67 = vector.broadcast %66 : vector<1x32xf32> to vector<16x32xf32>
    %68 = arith.addf %65, %67 : vector<16x32xf32>
    %c0_28 = arith.constant 0 : index
    %c0_29 = arith.constant 0 : index
    %69 = vector.load %arg4[%c0_28, %c0_29] : memref<16x32xf32, #tpu.memory_space<vmem>>, vector<16x32xf32>
    tpu.vector_store %arg4[%c0_28, %c0_29], %68 {strides = array<i32>} : memref<16x32xf32, #tpu.memory_space<vmem>>, vector<16x32xf32>,
    return
  }
  func.func @transform_0(%arg0: i32) -> (i32, i32) {
    %c0_i32 = arith.constant 0 : i32
    %c0_i32_0 = arith.constant 0 : i32
    return %arg0, %c0_i32 : i32, i32
  }
  func.func @transform_1(%arg0: i32) -> (i32, i32) {
    %c0_i32 = arith.constant 0 : i32
    %c0_i32_0 = arith.constant 0 : i32
    %c0_i32_1 = arith.constant 0 : i32
    return %c0_i32, %c0_i32_0 : i32, i32
  }
  func.func @transform_2(%arg0: i32) -> (i32, i32) {
    %c0_i32 = arith.constant 0 : i32
    %c0_i32_0 = arith.constant 0 : i32
    %c0_i32_1 = arith.constant 0 : i32
    return %c0_i32, %c0_i32_0 : i32, i32
  }
  func.func @transform_3(%arg0: i32) -> (i32, i32) {
    %c0_i32 = arith.constant 0 : i32
    %c0_i32_0 = arith.constant 0 : i32
    return %arg0, %c0_i32 : i32, i32
  }
}

module attributes {stable_mosaic.version = 11 : i64} {
  func.func @transform_kernel(%arg0: i32, %arg1: memref<16x32xf32, #tpu.memory_space<vmem>>, %arg2: memref<32x32xf32, #tpu.memory_space<vmem>>, %arg3: memref<3x32xf32, #tpu.memory_space<vmem>>, %arg4: memref<16x32xf32, #tpu.memory_space<vmem>>) attributes {dimension_semantics = [#tpu.dimension_semantics<parallel>], iteration_bounds = array<i64: 1>, scalar_prefetch = 0 : i64, scratch_operands = 0 : i64, tpu.core_type = #tpu.core_type<tc>, window_params = [{transform_indices = @transform_0, window_bounds = array<i64: 16, 32>}, {pipeline_mode = #tpu.pipeline_mode<synchronous>, transform_indices = @transform_1, window_bounds = array<i64: 32, 32>}, {pipeline_mode = #tpu.pipeline_mode<synchronous>, transform_indices = @transform_2, window_bounds = array<i64: 3, 32>}, {transform_indices = @transform_3, window_bounds = array<i64: 16, 32>}]} {
    %c0 = arith.constant 0 : index
    %c0_0 = arith.constant 0 : index
    %0 = vector.load %arg1[%c0, %c0_0] : memref<16x32xf32, #tpu.memory_space<vmem>>, vector<16x32xf32>
    %c0_1 = arith.constant 0 : index
    %c0_2 = arith.constant 0 : index
    %1 = vector.load %arg2[%c0_1, %c0_2] : memref<32x32xf32, #tpu.memory_space<vmem>>, vector<32x32xf32>
    %cst = arith.constant dense<0.000000e+00> : vector<16x32xf32>
    %2 = tpu.matmul %0, %1, %cst {dimension_numbers = #tpu.dot_dimension_numbers<[1], [0], [0], [1], [0, 0, 1, 1], [], []>} : vector<16x32xf32>, vector<32x32xf32>, vector<16x32xf32> -> vector<16x32xf32>
    %c0_3 = arith.constant 0 : index
    %c0_4 = arith.constant 0 : index
    %3 = vector.load %arg3[%c0_3, %c0_4] : memref<3x32xf32, #tpu.memory_space<vmem>>, vector<1x32xf32>
    %4 = vector.broadcast %3 : vector<1x32xf32> to vector<16x32xf32>
    %5 = arith.addf %2, %4 : vector<16x32xf32>
    %cst_5 = arith.constant 5.000000e-01 : f32
    %6 = vector.broadcast %cst_5 : f32 to vector<16x32xf32>
    %7 = arith.mulf %5, %6 : vector<16x32xf32>
    %cst_6 = arith.constant 0.707106769 : f32
    %8 = vector.broadcast %cst_6 : f32 to vector<16x32xf32>
    %9 = arith.mulf %5, %8 : vector<16x32xf32>
    %cst_7 = arith.constant 0.000000e+00 : f32
    %10 = vector.broadcast %cst_7 : f32 to vector<16x32xf32>
    %11 = arith.cmpf oge, %9, %10 : vector<16x32xf32>
    %cst_8 = arith.constant 1.000000e+00 : f32
    %cst_9 = arith.constant -1.000000e+00 : f32
    %12 = vector.broadcast %cst_8 : f32 to vector<16x32xf32>
    %13 = vector.broadcast %cst_9 : f32 to vector<16x32xf32>
    %14 = arith.select %11, %12, %13 : vector<16x32xi1>, vector<16x32xf32>
    %15 = math.absf %9 : vector<16x32xf32>
    %cst_10 = arith.constant 0.327591091 : f32
    %16 = vector.broadcast %cst_10 : f32 to vector<16x32xf32>
    %17 = arith.mulf %16, %15 : vector<16x32xf32>
    %cst_11 = arith.constant 1.000000e+00 : f32
    %18 = vector.broadcast %cst_11 : f32 to vector<16x32xf32>
    %19 = arith.addf %18, %17 : vector<16x32xf32>
    %cst_12 = arith.constant 1.000000e+00 : f32
    %20 = vector.broadcast %cst_12 : f32 to vector<16x32xf32>
    %21 = arith.divf %20, %19 : vector<16x32xf32>
    %cst_13 = arith.constant 1.06140542 : f32
    %22 = vector.broadcast %cst_13 : f32 to vector<16x32xf32>
    %23 = arith.mulf %21, %22 : vector<16x32xf32>
    %cst_14 = arith.constant -1.45315206 : f32
    %24 = vector.broadcast %cst_14 : f32 to vector<16x32xf32>
    %25 = arith.addf %24, %23 : vector<16x32xf32>
    %26 = arith.mulf %21, %25 : vector<16x32xf32>
    %cst_15 = arith.constant 1.42141378 : f32
    %27 = vector.broadcast %cst_15 : f32 to vector<16x32xf32>
    %28 = arith.addf %27, %26 : vector<16x32xf32>
    %29 = arith.mulf %21, %28 : vector<16x32xf32>
    %cst_16 = arith.constant -0.284496725 : f32
    %30 = vector.broadcast %cst_16 : f32 to vector<16x32xf32>
    %31 = arith.addf %30, %29 : vector<16x32xf32>
    %32 = arith.mulf %21, %31 : vector<16x32xf32>
    %cst_17 = arith.constant 0.254829586 : f32
    %33 = vector.broadcast %cst_17 : f32 to vector<16x32xf32>
    %34 = arith.addf %33, %32 : vector<16x32xf32>
    %35 = arith.mulf %21, %34 : vector<16x32xf32>
    %cst_18 = arith.constant 0.000000e+00 : f32
    %36 = vector.broadcast %cst_18 : f32 to vector<16x32xf32>
    %37 = arith.subf %36, %15 : vector<16x32xf32>
    %38 = arith.mulf %37, %15 : vector<16x32xf32>
    %39 = math.exp %38 : vector<16x32xf32>
    %40 = arith.mulf %35, %39 : vector<16x32xf32>
    %cst_19 = arith.constant 1.000000e+00 : f32
    %41 = vector.broadcast %cst_19 : f32 to vector<16x32xf32>
    %42 = arith.subf %41, %40 : vector<16x32xf32>
    %43 = arith.mulf %14, %42 : vector<16x32xf32>
    %cst_20 = arith.constant 1.000000e+00 : f32
    %44 = vector.broadcast %cst_20 : f32 to vector<16x32xf32>
    %45 = arith.addf %44, %43 : vector<16x32xf32>
    %46 = arith.mulf %7, %45 : vector<16x32xf32>
    %cst_21 = arith.constant dense<0.000000e+00> : vector<16xf32>
    %47 = vector.multi_reduction <add>, %46, %cst_21 [1] : vector<16x32xf32> to vector<16xf32>
    %48 = vector.shape_cast %47 : vector<16xf32> to vector<16x1xf32>
    %cst_22 = arith.constant 3.200000e+01 : f32
    %49 = vector.broadcast %cst_22 : f32 to vector<16x1xf32>
    %50 = arith.divf %48, %49 : vector<16x1xf32>
    %51 = vector.broadcast %50 : vector<16x1xf32> to vector<16x32xf32>
    %52 = arith.subf %46, %51 : vector<16x32xf32>
    %53 = arith.mulf %52, %52 : vector<16x32xf32>
    %cst_23 = arith.constant dense<0.000000e+00> : vector<16xf32>
    %54 = vector.multi_reduction <add>, %53, %cst_23 [1] : vector<16x32xf32> to vector<16xf32>
    %55 = vector.shape_cast %54 : vector<16xf32> to vector<16x1xf32>
    %cst_24 = arith.constant 3.200000e+01 : f32
    %56 = vector.broadcast %cst_24 : f32 to vector<16x1xf32>
    %57 = arith.divf %55, %56 : vector<16x1xf32>
    %cst_25 = arith.constant 9.99999996E-13 : f32
    %58 = vector.broadcast %cst_25 : f32 to vector<16x1xf32>
    %59 = arith.addf %57, %58 : vector<16x1xf32>
    %60 = math.rsqrt %59 : vector<16x1xf32>
    %61 = vector.broadcast %60 : vector<16x1xf32> to vector<16x32xf32>
    %62 = arith.mulf %52, %61 : vector<16x32xf32>
    %c1 = arith.constant 1 : index
    %c0_26 = arith.constant 0 : index
    %63 = vector.load %arg3[%c1, %c0_26] : memref<3x32xf32, #tpu.memory_space<vmem>>, vector<1x32xf32>
    %64 = vector.broadcast %63 : vector<1x32xf32> to vector<16x32xf32>
    %65 = arith.mulf %62, %64 : vector<16x32xf32>
    %c2 = arith.constant 2 : index
    %c0_27 = arith.constant 0 : index
    %66 = vector.load %arg3[%c2, %c0_27] : memref<3x32xf32, #tpu.memory_space<vmem>>, vector<1x32xf32>
    %67 = vector.broadcast %66 : vector<1x32xf32> to vector<16x32xf32>
    %68 = arith.addf %65, %67 : vector<16x32xf32>
    %c0_28 = arith.constant 0 : index
    %c0_29 = arith.constant 0 : index
    %69 = vector.load %arg4[%c0_28, %c0_29] : memref<16x32xf32, #tpu.memory_space<vmem>>, vector<16x32xf32>
    tpu.vector_store %arg4[%c0_28, %c0_29], %68 {strides = array<i32>} : memref<16x32xf32, #tpu.memory_space<vmem>>, vector<16x32xf32>,
    return
  }
  func.func @transform_0(%arg0: i32) -> (i32, i32) {
    %c0_i32 = arith.constant 0 : i32
    %c0_i32_0 = arith.constant 0 : i32
    return %arg0, %c0_i32 : i32, i32
  }
  func.func @transform_1(%arg0: i32) -> (i32, i32) {
    %c0_i32 = arith.constant 0 : i32
    %c0_i32_0 = arith.constant 0 : i32
    %c0_i32_1 = arith.constant 0 : i32
    return %c0_i32, %c0_i32_0 : i32, i32
  }
  func.func @transform_2(%arg0: i32) -> (i32, i32) {
    %c0_i32 = arith.constant 0 : i32
    %c0_i32_0 = arith.constant 0 : i32
    %c0_i32_1 = arith.constant 0 : i32
    return %c0_i32, %c0_i32_0 : i32, i32
  }
  func.func @transform_3(%arg0: i32) -> (i32, i32) {
    %c0_i32 = arith.constant 0 : i32
    %c0_i32_0 = arith.constant 0 : i32
    return %arg0, %c0_i32 : i32, i32
  }
}

</mosaic_0001>

<llo_original>
// kernel: tpu_custom_call.1
$region0: #{tpu_custom_call.1}
  #allocation0 [shape = 'u32[]', space=smem, size = 0x4, offset = 0x4, fixed_abs, tag = 'smem constant byte address 0x4 - core index']
  #allocation1 [shape = 'u32[144,128]{1,0:T(1,128)}', space=vmem, size = 0x12000, scoped, tag = 'internal scratch']
  %s0 = inlined_call_operand.hbm [shape: f32[16,32], index: 0, kind: input, shape index: {}]
  %s1 = inlined_call_operand.hbm [shape: f32[32,32], index: 1, kind: input, shape index: {}]
  %s2 = inlined_call_operand.hbm [shape: f32[3,32], index: 2, kind: input, shape index: {}]
  %s3 = inlined_call_operand.hbm [shape: f32[16,32], index: 3, kind: output, shape index: {}]
  %s4 = sld [smem:[#allocation0]]
  $region34: #{tpu_custom_call.1} parent=0
    _
  %s6 = ssub.s32 1, %s4
  %s7 = scalar_select 0, %s6, %s4
  $region1: #{tpu_custom_call.1} parent=0
    #allocation2 [shape = 'u8[8192]{0}', space=vmem, size = 0x2000, scoped, tag = 'input window, operand 0, single buffered']
    #allocation3 [shape = 's32[1]{0}', space=sflag, size = 0x4, scoped, tag = 'scoped memory for tpu_custom_call.1']
    #allocation4 [shape = 's32[1]{0}', space=sflag, size = 0x4, scoped, tag = 'scoped memory for tpu_custom_call.1']
    #allocation5 [shape = 'u8[16384]{0}', space=vmem, size = 0x4000, scoped, tag = 'input window, operand 1, single buffered']
    #allocation6 [shape = 's32[1]{0}', space=sflag, size = 0x4, scoped, tag = 'scoped memory for tpu_custom_call.1']
    #allocation7 [shape = 'u8[2048]{0}', space=vmem, size = 0x800, scoped, tag = 'input window, operand 2, single buffered']
    #allocation8 [shape = 'u8[8192]{0}', space=vmem, size = 0x2000, scoped, tag = 'output window, operand 0, single buffered']
    %8 = vsyncpa [#allocation3], 0
    %9 = vsyncpa [#allocation6], 0
    %10 = vsyncpa [#allocation4], 0
    // Predicated region
    $region2: #{tpu_custom_call.1} parent=1 // pred_check
      _
    $region3: #{tpu_custom_call.1} parent=1 // pred_check_branch
      %12 = sbr.rel (0) target = $region5
    $region4: #{tpu_custom_call.1} parent=1 // pred_region
      %s14 = ssub.s32 256, 256
      %15 = vsyncadd [#allocation3], %s14
      %s16 = sshll.u32 [#allocation2], 4
      %s17 = int_to_ptr.vmem [resolvable:$true] %s16
      %22 = dma.hbm_to_vmem [thread:$0]  %s0, 256, %s17, [#allocation3], 128, 128, 8
    $region5: #{tpu_custom_call.1} parent=1 // pred_fallthru
      _
    // Predicated region
    $region6: #{tpu_custom_call.1} parent=1 // pred_check
      _
    $region7: #{tpu_custom_call.1} parent=1 // pred_check_branch
      %24 = sbr.rel (0) target = $region9
    $region8: #{tpu_custom_call.1} parent=1 // pred_region
      %s26 = ssub.s32 512, 512
      %27 = vsyncadd [#allocation6], %s26
      %s28 = sshll.u32 [#allocation5], 4
      %s29 = int_to_ptr.vmem [resolvable:$true] %s28
      %34 = dma.hbm_to_vmem [thread:$0]  %s1, 512, %s29, [#allocation6], 128, 128, 8
    $region9: #{tpu_custom_call.1} parent=1 // pred_fallthru
      _
    // Predicated region
    $region10: #{tpu_custom_call.1} parent=1 // pred_check
      _
    $region11: #{tpu_custom_call.1} parent=1 // pred_check_branch
      %36 = sbr.rel (0) target = $region13
    $region12: #{tpu_custom_call.1} parent=1 // pred_region
      %s38 = ssub.s32 64, 64
      %39 = vsyncadd [#allocation6], %s38
      %s41 = sshll.u32 [#allocation7], 4
      %s42 = int_to_ptr.vmem [resolvable:$true] %s41
      %44 = dma.hbm_to_vmem [thread:$0]  %s2, 64, %s42, [#allocation6]
    $region13: #{tpu_custom_call.1} parent=1 // pred_fallthru
      _
    // Predicated region
    $region14: #{tpu_custom_call.1} parent=1 // pred_check
      _
    $region15: #{tpu_custom_call.1} parent=1 // pred_check_branch
      %46 = sbr.rel (0) target = $region17
    $region16: #{tpu_custom_call.1} parent=1 // pred_region
      %47 = dma.done [#allocation3], 256
    $region17: #{tpu_custom_call.1} parent=1 // pred_fallthru
      _
    // Predicated region
    $region18: #{tpu_custom_call.1} parent=1 // pred_check
      _
    $region19: #{tpu_custom_call.1} parent=1 // pred_check_branch
      %49 = sbr.rel (0) target = $region21
    $region20: #{tpu_custom_call.1} parent=1 // pred_region
      %50 = dma.done [#allocation6], 512
    $region21: #{tpu_custom_call.1} parent=1 // pred_fallthru
      _
    // Predicated region
    $region22: #{tpu_custom_call.1} parent=1 // pred_check
      _
    $region23: #{tpu_custom_call.1} parent=1 // pred_check_branch
      %52 = sbr.rel (0) target = $region25
    $region24: #{tpu_custom_call.1} parent=1 // pred_region
      %53 = dma.done [#allocation6], 64
    $region25: #{tpu_custom_call.1} parent=1 // pred_fallthru
      _
    %v54 = vld [vmem:[#allocation2] sm:$0xff]
    %v55 = vld [vmem:[#allocation2 + $0x8] sm:$0xff]
    %v56 = vld [vmem:[#allocation5] sm:$0xff]
    %v57 = vld [vmem:[#allocation5 + $0x8] sm:$0xff]
    %v58 = vld [vmem:[#allocation5 + $0x10] sm:$0xff]
    %v59 = vld [vmem:[#allocation5 + $0x18] sm:$0xff]
    %v60 = vld [vmem:[#allocation7] sm:$0x1]
    %v61 = vlaneseq
    %v62 = vshrl.u32 %v61, 7
    %v63 = vsub.s32 0, %v62
    %v64 = vrot.slane %v60, %v63
    %vm65 = vcmask 261120
    %v67 = vsel %vm65, %v54, 0
    %v70 = vsel %vm65, %v55, 0
    %72 = vmatprep.subr.mxu0 0.0
    %73 = vmatpush1.msra.mxu0 0.0
    %74 = vmatprep.subr.mxu0 0.0
    %75 = vmatpush1.msra.mxu0 0.0
    %76 = vmatprep.subr.mxu0 0.0
    %77 = vmatpush1.msra.mxu0 0.0
    %78 = vmatprep.subr.mxu0 0.0
    %79 = vmatpush1.msra.mxu0 0.0
    %80 = vmatprep.subr.mxu0 0.0
    %81 = vmatpush1.msra.mxu0 0.0
    %82 = vmatprep.subr.mxu0 0.0
    %83 = vmatpush1.msra.mxu0 0.0
    %84 = vmatprep.subr.mxu0 0.0
    %85 = vmatpush1.msra.mxu0 0.0
    %86 = vmatprep.subr.mxu0 0.0
    %87 = vmatpush1.msra.mxu0 0.0
    %88 = vmatprep.subr.mxu0 0.0
    %89 = vmatpush1.msra.mxu0 0.0
    %90 = vmatprep.subr.mxu0 0.0
    %91 = vmatpush1.msra.mxu0 0.0
    %92 = vmatprep.subr.mxu0 0.0
    %93 = vmatpush1.msra.mxu0 0.0
    %94 = vmatprep.subr.mxu0 0.0
    %95 = vmatpush1.msra.mxu0 0.0
    %96 = vmatprep.subr.mxu0 0.0
    %97 = vmatpush1.msra.mxu0 %v59
    %98 = vmatprep.subr.mxu0 0.0
    %99 = vmatpush1.msra.mxu0 %v58
    %100 = vmatprep.subr.mxu0 0.0
    %101 = vmatpush1.msra.mxu0 %v57
    %102 = vmatprep.subr.mxu0 0.0
    %103 = vmatpush1.msra.mxu0 %v56
    %104 = vmatprep.subr.mxu0 0.0
    %105 = vmatpush2.msra.mxu0 0.0
    %106 = vmatprep.subr.mxu0 0.0
    %107 = vmatpush2.msra.mxu0 0.0
    %108 = vmatprep.subr.mxu0 0.0
    %109 = vmatpush2.msra.mxu0 0.0
    %110 = vmatprep.subr.mxu0 0.0
    %111 = vmatpush2.msra.mxu0 0.0
    %112 = vmatprep.subr.mxu0 0.0
    %113 = vmatpush2.msra.mxu0 0.0
    %114 = vmatprep.subr.mxu0 0.0
    %115 = vmatpush2.msra.mxu0 0.0
    %116 = vmatprep.subr.mxu0 0.0
    %117 = vmatpush2.msra.mxu0 0.0
    %118 = vmatprep.subr.mxu0 0.0
    %119 = vmatpush2.msra.mxu0 0.0
    %120 = vmatprep.subr.mxu0 0.0
    %121 = vmatpush2.msra.mxu0 0.0
    %122 = vmatprep.subr.mxu0 0.0
    %123 = vmatpush2.msra.mxu0 0.0
    %124 = vmatprep.subr.mxu0 0.0
    %125 = vmatpush2.msra.mxu0 0.0
    %126 = vmatprep.subr.mxu0 0.0
    %127 = vmatpush2.msra.mxu0 0.0
    %128 = vmatprep.subr.mxu0 0.0
    %129 = vmatpush2.msra.mxu0 0.0
    %130 = vmatprep.subr.mxu0 0.0
    %131 = vmatpush2.msra.mxu0 0.0
    %132 = vmatprep.subr.mxu0 0.0
    %133 = vmatpush2.msra.mxu0 0.0
    %134 = vmatprep.subr.mxu0 0.0
    %135 = vmatpush2.msra.mxu0 0.0
    %136 = vmatprep.mubr.f32.mxu0 0.0
    %137 = vmatmul.mubr.f32.gmra.mxu0 %v67
    %v138 = vpop.f32.mrf.mxu0
    %v139 = vadd.f32 %v64, %v138
    %v140 = vpop.f32.mrf.mxu0
    %141 = vmatprep.mubr.f32.mxu0 0.0
    %142 = vmatmul.mubr.f32.gmra.mxu0 %v70
    %v143 = vpop.f32.mrf.mxu0
    %v144 = vadd.f32 %v64, %v143
    %v145 = vpop.f32.mrf.mxu0
    %146 = vdwg.mxu0
    %v147 = vmul.f32 %v139, 0.5
    %v148 = vmul.f32 %v144, 0.5
    %v149 = vmul.f32 %v139, 0.70710677
    %v150 = vmul.f32 %v144, 0.70710677
    %vm151 = vcmp.ge.f32.partialorder %v149, 0.0
    %vm152 = vcmp.ge.f32.partialorder %v150, 0.0
    %v153 = vsel %vm151, 1.0, -1.0
    %v154 = vsel %vm152, 1.0, -1.0
    %v155 = vand.u32 2147483647, %v149
    %v156 = vand.u32 2147483647, %v150
    %v157 = vmul.f32 %v155, 0.3275911
    %v158 = vmul.f32 %v156, 0.3275911
    %v159 = vadd.f32 %v157, 1.0
    %v160 = vadd.f32 %v158, 1.0
    %v161 = vrcp.pop %v159
    %v162 = vmul.f32 1.0, %v161
    %v163 = vrcp.pop %v160
    %v164 = vmul.f32 1.0, %v163
    %v165 = vmul.f32 %v162, 1.0614054
    %v166 = vmul.f32 %v164, 1.0614054
    %v167 = vadd.f32 %v165, -1.4531521
    %v168 = vadd.f32 %v166, -1.4531521
    %v169 = vmul.f32 %v162, %v167
    %v170 = vmul.f32 %v164, %v168
    %v171 = vadd.f32 %v169, 1.4214138
    %v172 = vadd.f32 %v170, 1.4214138
    %v173 = vmul.f32 %v162, %v171
    %v174 = vmul.f32 %v164, %v172
    %v175 = vadd.f32 %v173, -0.28449672
    %v176 = vadd.f32 %v174, -0.28449672
    %v177 = vmul.f32 %v162, %v175
    %v178 = vmul.f32 %v164, %v176
    %v179 = vadd.f32 %v177, 0.2548296
    %v180 = vadd.f32 %v178, 0.2548296
    %v181 = vmul.f32 %v162, %v179
    %v182 = vmul.f32 %v164, %v180
    %v183 = vsub.f32 0.0, %v155
    %v184 = vsub.f32 0.0, %v156
    %v185 = vmul.f32 %v183, %v155
    %v186 = vmul.f32 %v184, %v156
    %v187 = vmul.f32 %v185, 1.442695
    %v188 = vpow.pop %v187
    %v189 = vmul.f32 %v186, 1.442695
    %v190 = vpow.pop %v189
    %v191 = vmul.f32 %v181, %v188
    %v192 = vmul.f32 %v182, %v190
    %v193 = vsub.f32 1.0, %v191
    %v194 = vsub.f32 1.0, %v192
    %v195 = vmul.f32 %v153, %v193
    %v196 = vmul.f32 %v154, %v194
    %v197 = vadd.f32 %v195, 1.0
    %v198 = vadd.f32 %v196, 1.0
    %v199 = vmul.f32 %v147, %v197
    %v200 = vmul.f32 %v148, %v198
    %v201 = vsel %vm65, %v199, 0.0
    %202 = vadd.xlane.f32.xlu0 %v201
    %v203 = vpop.xlane.xlu0 %202
    %v204 = vsel %vm65, %v200, 0.0
    %205 = vadd.xlane.f32.xlu0 %v204
    %v206 = vpop.xlane.xlu0 %205
    %v207 = vrcp.pop 32.0
    %v208 = vmul.f32 %v203, %v207
    %v209 = vmul.f32 %v206, %v207
    %v210 = vsub.f32 %v199, %v208
    %v211 = vsub.f32 %v200, %v209
    %v212 = vmul.f32 %v210, %v210
    %v213 = vmul.f32 %v211, %v211
    %v214 = vsel %vm65, %v212, 0.0
    %215 = vadd.xlane.f32.xlu0 %v214
    %v216 = vpop.xlane.xlu0 %215
    %v217 = vsel %vm65, %v213, 0.0
    %218 = vadd.xlane.f32.xlu0 %v217
    %v219 = vpop.xlane.xlu0 %218
    %v220 = vmul.f32 %v216, %v207
    %v221 = vmul.f32 %v219, %v207
    %v222 = vadd.f32 %v220, 1e-12
    %v223 = vadd.f32 %v221, 1e-12
    %v224 = vrsqrt.pop %v222
    %v225 = vrsqrt.pop %v223
    %v226 = vmul.f32 %v210, %v224
    %v227 = vmul.f32 %v211, %v225
    %v228 = vld [vmem:[#allocation7 + $0x1] sm:$0x1]
    %v229 = vlaneseq
    %v230 = vshrl.u32 %v229, 7
    %v231 = vsub.s32 0, %v230
    %v232 = vrot.slane %v228, %v231
    %v233 = vmul.f32 %v226, %v232
    %v234 = vmul.f32 %v227, %v232
    %v235 = vld [vmem:[#allocation7 + $0x2] sm:$0x1]
    %v236 = vlaneseq
    %v237 = vshrl.u32 %v236, 7
    %v238 = vsub.s32 0, %v237
    %v239 = vrot.slane %v235, %v238
    %v240 = vadd.f32 %v233, %v239
    %v241 = vadd.f32 %v234, %v239
    %242 = vst.msk [vmem:[#allocation8] sm:$0xff] %vm65, %v240
    %243 = vst.msk [vmem:[#allocation8 + $0x8] sm:$0xff] %vm65, %v241
    // Predicated region
    $region26: #{tpu_custom_call.1} parent=1 // pred_check
      _
    $region27: #{tpu_custom_call.1} parent=1 // pred_check_branch
      %245 = sbr.rel (0) target = $region29
    $region28: #{tpu_custom_call.1} parent=1 // pred_region
      %s247 = ssub.s32 256, 256
      %248 = vsyncadd [#allocation4], %s247
      %s249 = sshll.u32 [#allocation8], 4
      %s250 = int_to_ptr.vmem [resolvable:$true] %s249
      %255 = dma.vmem_to_hbm [thread:$0]  %s250, 256, %s3, [#allocation4], 128, 128, 8
    $region29: #{tpu_custom_call.1} parent=1 // pred_fallthru
      _
    // Predicated region
    $region30: #{tpu_custom_call.1} parent=1 // pred_check
      _
    $region31: #{tpu_custom_call.1} parent=1 // pred_check_branch
      %257 = sbr.rel (0) target = $region33
    $region32: #{tpu_custom_call.1} parent=1 // pred_region
      %258 = dma.done [#allocation4], 256
    $region33: #{tpu_custom_call.1} parent=1 // pred_fallthru
      _
    %259 = vsyncpa [#allocation3], 1
    %260 = vsyncpa [#allocation6], 1
    %261 = vsyncpa [#allocation4], 1

// kernel: tpu_custom_call.1
$region0: #{tpu_custom_call.1}
  #allocation0 [shape = 'u32[]', space=smem, size = 0x4, offset = 0x4, fixed_abs, tag = 'smem constant byte address 0x4 - core index']
  #allocation1 [shape = 'u32[144,128]{1,0:T(1,128)}', space=vmem, size = 0x12000, scoped, tag = 'internal scratch']
  %s0 = inlined_call_operand.hbm [shape: f32[16,32], index: 0, kind: input, shape index: {}]
  %s1 = inlined_call_operand.hbm [shape: f32[32,32], index: 1, kind: input, shape index: {}]
  %s2 = inlined_call_operand.hbm [shape: f32[3,32], index: 2, kind: input, shape index: {}]
  %s3 = inlined_call_operand.hbm [shape: f32[16,32], index: 3, kind: output, shape index: {}]
  %s4 = sld [smem:[#allocation0]]
  $region34: #{tpu_custom_call.1} parent=0
    _
  %s6 = ssub.s32 1, %s4
  %s7 = scalar_select 0, %s6, %s4
  $region1: #{tpu_custom_call.1} parent=0
    #allocation2 [shape = 'u8[8192]{0}', space=vmem, size = 0x2000, scoped, tag = 'input window, operand 0, single buffered']
    #allocation3 [shape = 's32[1]{0}', space=sflag, size = 0x4, scoped, tag = 'scoped memory for tpu_custom_call.1']
    #allocation4 [shape = 's32[1]{0}', space=sflag, size = 0x4, scoped, tag = 'scoped memory for tpu_custom_call.1']
    #allocation5 [shape = 'u8[16384]{0}', space=vmem, size = 0x4000, scoped, tag = 'input window, operand 1, single buffered']
    #allocation6 [shape = 's32[1]{0}', space=sflag, size = 0x4, scoped, tag = 'scoped memory for tpu_custom_call.1']
    #allocation7 [shape = 'u8[2048]{0}', space=vmem, size = 0x800, scoped, tag = 'input window, operand 2, single buffered']
    #allocation8 [shape = 'u8[8192]{0}', space=vmem, size = 0x2000, scoped, tag = 'output window, operand 0, single buffered']
    %8 = vsyncpa [#allocation3], 0
    %9 = vsyncpa [#allocation6], 0
    %10 = vsyncpa [#allocation4], 0
    // Predicated region
    $region2: #{tpu_custom_call.1} parent=1 // pred_check
      _
    $region3: #{tpu_custom_call.1} parent=1 // pred_check_branch
      %12 = sbr.rel (0) target = $region5
    $region4: #{tpu_custom_call.1} parent=1 // pred_region
      %s14 = ssub.s32 256, 256
      %15 = vsyncadd [#allocation3], %s14
      %s16 = sshll.u32 [#allocation2], 4
      %s17 = int_to_ptr.vmem [resolvable:$true] %s16
      %22 = dma.hbm_to_vmem [thread:$0]  %s0, 256, %s17, [#allocation3], 128, 128, 8
    $region5: #{tpu_custom_call.1} parent=1 // pred_fallthru
      _
    // Predicated region
    $region6: #{tpu_custom_call.1} parent=1 // pred_check
      _
    $region7: #{tpu_custom_call.1} parent=1 // pred_check_branch
      %24 = sbr.rel (0) target = $region9
    $region8: #{tpu_custom_call.1} parent=1 // pred_region
      %s26 = ssub.s32 512, 512
      %27 = vsyncadd [#allocation6], %s26
      %s28 = sshll.u32 [#allocation5], 4
      %s29 = int_to_ptr.vmem [resolvable:$true] %s28
      %34 = dma.hbm_to_vmem [thread:$0]  %s1, 512, %s29, [#allocation6], 128, 128, 8
    $region9: #{tpu_custom_call.1} parent=1 // pred_fallthru
      _
    // Predicated region
    $region10: #{tpu_custom_call.1} parent=1 // pred_check
      _
    $region11: #{tpu_custom_call.1} parent=1 // pred_check_branch
      %36 = sbr.rel (0) target = $region13
    $region12: #{tpu_custom_call.1} parent=1 // pred_region
      %s38 = ssub.s32 64, 64
      %39 = vsyncadd [#allocation6], %s38
      %s41 = sshll.u32 [#allocation7], 4
      %s42 = int_to_ptr.vmem [resolvable:$true] %s41
      %44 = dma.hbm_to_vmem [thread:$0]  %s2, 64, %s42, [#allocation6]
    $region13: #{tpu_custom_call.1} parent=1 // pred_fallthru
      _
    // Predicated region
    $region14: #{tpu_custom_call.1} parent=1 // pred_check
      _
    $region15: #{tpu_custom_call.1} parent=1 // pred_check_branch
      %46 = sbr.rel (0) target = $region17
    $region16: #{tpu_custom_call.1} parent=1 // pred_region
      %47 = dma.done [#allocation3], 256
    $region17: #{tpu_custom_call.1} parent=1 // pred_fallthru
      _
    // Predicated region
    $region18: #{tpu_custom_call.1} parent=1 // pred_check
      _
    $region19: #{tpu_custom_call.1} parent=1 // pred_check_branch
      %49 = sbr.rel (0) target = $region21
    $region20: #{tpu_custom_call.1} parent=1 // pred_region
      %50 = dma.done [#allocation6], 512
    $region21: #{tpu_custom_call.1} parent=1 // pred_fallthru
      _
    // Predicated region
    $region22: #{tpu_custom_call.1} parent=1 // pred_check
      _
    $region23: #{tpu_custom_call.1} parent=1 // pred_check_branch
      %52 = sbr.rel (0) target = $region25
    $region24: #{tpu_custom_call.1} parent=1 // pred_region
      %53 = dma.done [#allocation6], 64
    $region25: #{tpu_custom_call.1} parent=1 // pred_fallthru
      _
    %v54 = vld [vmem:[#allocation2] sm:$0xff]
    %v55 = vld [vmem:[#allocation2 + $0x8] sm:$0xff]
    %v56 = vld [vmem:[#allocation5] sm:$0xff]
    %v57 = vld [vmem:[#allocation5 + $0x8] sm:$0xff]
    %v58 = vld [vmem:[#allocation5 + $0x10] sm:$0xff]
    %v59 = vld [vmem:[#allocation5 + $0x18] sm:$0xff]
    %v60 = vld [vmem:[#allocation7] sm:$0x1]
    %v61 = vlaneseq
    %v62 = vshrl.u32 %v61, 7
    %v63 = vsub.s32 0, %v62
    %v64 = vrot.slane %v60, %v63
    %vm65 = vcmask 261120
    %v67 = vsel %vm65, %v54, 0
    %v70 = vsel %vm65, %v55, 0
    %72 = vmatprep.subr.mxu0 0.0
    %73 = vmatpush1.msra.mxu0 0.0
    %74 = vmatprep.subr.mxu0 0.0
    %75 = vmatpush1.msra.mxu0 0.0
    %76 = vmatprep.subr.mxu0 0.0
    %77 = vmatpush1.msra.mxu0 0.0
    %78 = vmatprep.subr.mxu0 0.0
    %79 = vmatpush1.msra.mxu0 0.0
    %80 = vmatprep.subr.mxu0 0.0
    %81 = vmatpush1.msra.mxu0 0.0
    %82 = vmatprep.subr.mxu0 0.0
    %83 = vmatpush1.msra.mxu0 0.0
    %84 = vmatprep.subr.mxu0 0.0
    %85 = vmatpush1.msra.mxu0 0.0
    %86 = vmatprep.subr.mxu0 0.0
    %87 = vmatpush1.msra.mxu0 0.0
    %88 = vmatprep.subr.mxu0 0.0
    %89 = vmatpush1.msra.mxu0 0.0
    %90 = vmatprep.subr.mxu0 0.0
    %91 = vmatpush1.msra.mxu0 0.0
    %92 = vmatprep.subr.mxu0 0.0
    %93 = vmatpush1.msra.mxu0 0.0
    %94 = vmatprep.subr.mxu0 0.0
    %95 = vmatpush1.msra.mxu0 0.0
    %96 = vmatprep.subr.mxu0 0.0
    %97 = vmatpush1.msra.mxu0 %v59
    %98 = vmatprep.subr.mxu0 0.0
    %99 = vmatpush1.msra.mxu0 %v58
    %100 = vmatprep.subr.mxu0 0.0
    %101 = vmatpush1.msra.mxu0 %v57
    %102 = vmatprep.subr.mxu0 0.0
    %103 = vmatpush1.msra.mxu0 %v56
    %104 = vmatprep.subr.mxu0 0.0
    %105 = vmatpush2.msra.mxu0 0.0
    %106 = vmatprep.subr.mxu0 0.0
    %107 = vmatpush2.msra.mxu0 0.0
    %108 = vmatprep.subr.mxu0 0.0
    %109 = vmatpush2.msra.mxu0 0.0
    %110 = vmatprep.subr.mxu0 0.0
    %111 = vmatpush2.msra.mxu0 0.0
    %112 = vmatprep.subr.mxu0 0.0
    %113 = vmatpush2.msra.mxu0 0.0
    %114 = vmatprep.subr.mxu0 0.0
    %115 = vmatpush2.msra.mxu0 0.0
    %116 = vmatprep.subr.mxu0 0.0
    %117 = vmatpush2.msra.mxu0 0.0
    %118 = vmatprep.subr.mxu0 0.0
    %119 = vmatpush2.msra.mxu0 0.0
    %120 = vmatprep.subr.mxu0 0.0
    %121 = vmatpush2.msra.mxu0 0.0
    %122 = vmatprep.subr.mxu0 0.0
    %123 = vmatpush2.msra.mxu0 0.0
    %124 = vmatprep.subr.mxu0 0.0
    %125 = vmatpush2.msra.mxu0 0.0
    %126 = vmatprep.subr.mxu0 0.0
    %127 = vmatpush2.msra.mxu0 0.0
    %128 = vmatprep.subr.mxu0 0.0
    %129 = vmatpush2.msra.mxu0 0.0
    %130 = vmatprep.subr.mxu0 0.0
    %131 = vmatpush2.msra.mxu0 0.0
    %132 = vmatprep.subr.mxu0 0.0
    %133 = vmatpush2.msra.mxu0 0.0
    %134 = vmatprep.subr.mxu0 0.0
    %135 = vmatpush2.msra.mxu0 0.0
    %136 = vmatprep.mubr.f32.mxu0 0.0
    %137 = vmatmul.mubr.f32.gmra.mxu0 %v67
    %v138 = vpop.f32.mrf.mxu0
    %v139 = vadd.f32 %v64, %v138
    %v140 = vpop.f32.mrf.mxu0
    %141 = vmatprep.mubr.f32.mxu0 0.0
    %142 = vmatmul.mubr.f32.gmra.mxu0 %v70
    %v143 = vpop.f32.mrf.mxu0
    %v144 = vadd.f32 %v64, %v143
    %v145 = vpop.f32.mrf.mxu0
    %146 = vdwg.mxu0
    %v147 = vmul.f32 %v139, 0.5
    %v148 = vmul.f32 %v144, 0.5
    %v149 = vmul.f32 %v139, 0.70710677
    %v150 = vmul.f32 %v144, 0.70710677
    %vm151 = vcmp.ge.f32.partialorder %v149, 0.0
    %vm152 = vcmp.ge.f32.partialorder %v150, 0.0
    %v153 = vsel %vm151, 1.0, -1.0
    %v154 = vsel %vm152, 1.0, -1.0
    %v155 = vand.u32 2147483647, %v149
    %v156 = vand.u32 2147483647, %v150
    %v157 = vmul.f32 %v155, 0.3275911
    %v158 = vmul.f32 %v156, 0.3275911
    %v159 = vadd.f32 %v157, 1.0
    %v160 = vadd.f32 %v158, 1.0
    %v161 = vrcp.pop %v159
    %v162 = vmul.f32 1.0, %v161
    %v163 = vrcp.pop %v160
    %v164 = vmul.f32 1.0, %v163
    %v165 = vmul.f32 %v162, 1.0614054
    %v166 = vmul.f32 %v164, 1.0614054
    %v167 = vadd.f32 %v165, -1.4531521
    %v168 = vadd.f32 %v166, -1.4531521
    %v169 = vmul.f32 %v162, %v167
    %v170 = vmul.f32 %v164, %v168
    %v171 = vadd.f32 %v169, 1.4214138
    %v172 = vadd.f32 %v170, 1.4214138
    %v173 = vmul.f32 %v162, %v171
    %v174 = vmul.f32 %v164, %v172
    %v175 = vadd.f32 %v173, -0.28449672
    %v176 = vadd.f32 %v174, -0.28449672
    %v177 = vmul.f32 %v162, %v175
    %v178 = vmul.f32 %v164, %v176
    %v179 = vadd.f32 %v177, 0.2548296
    %v180 = vadd.f32 %v178, 0.2548296
    %v181 = vmul.f32 %v162, %v179
    %v182 = vmul.f32 %v164, %v180
    %v183 = vsub.f32 0.0, %v155
    %v184 = vsub.f32 0.0, %v156
    %v185 = vmul.f32 %v183, %v155
    %v186 = vmul.f32 %v184, %v156
    %v187 = vmul.f32 %v185, 1.442695
    %v188 = vpow.pop %v187
    %v189 = vmul.f32 %v186, 1.442695
    %v190 = vpow.pop %v189
    %v191 = vmul.f32 %v181, %v188
    %v192 = vmul.f32 %v182, %v190
    %v193 = vsub.f32 1.0, %v191
    %v194 = vsub.f32 1.0, %v192
    %v195 = vmul.f32 %v153, %v193
    %v196 = vmul.f32 %v154, %v194
    %v197 = vadd.f32 %v195, 1.0
    %v198 = vadd.f32 %v196, 1.0
    %v199 = vmul.f32 %v147, %v197
    %v200 = vmul.f32 %v148, %v198
    %v201 = vsel %vm65, %v199, 0.0
    %202 = vadd.xlane.f32.xlu0 %v201
    %v203 = vpop.xlane.xlu0 %202
    %v204 = vsel %vm65, %v200, 0.0
    %205 = vadd.xlane.f32.xlu0 %v204
    %v206 = vpop.xlane.xlu0 %205
    %v207 = vrcp.pop 32.0
    %v208 = vmul.f32 %v203, %v207
    %v209 = vmul.f32 %v206, %v207
    %v210 = vsub.f32 %v199, %v208
    %v211 = vsub.f32 %v200, %v209
    %v212 = vmul.f32 %v210, %v210
    %v213 = vmul.f32 %v211, %v211
    %v214 = vsel %vm65, %v212, 0.0
    %215 = vadd.xlane.f32.xlu0 %v214
    %v216 = vpop.xlane.xlu0 %215
    %v217 = vsel %vm65, %v213, 0.0
    %218 = vadd.xlane.f32.xlu0 %v217
    %v219 = vpop.xlane.xlu0 %218
    %v220 = vmul.f32 %v216, %v207
    %v221 = vmul.f32 %v219, %v207
    %v222 = vadd.f32 %v220, 1e-12
    %v223 = vadd.f32 %v221, 1e-12
    %v224 = vrsqrt.pop %v222
    %v225 = vrsqrt.pop %v223
    %v226 = vmul.f32 %v210, %v224
    %v227 = vmul.f32 %v211, %v225
    %v228 = vld [vmem:[#allocation7 + $0x1] sm:$0x1]
    %v229 = vlaneseq
    %v230 = vshrl.u32 %v229, 7
    %v231 = vsub.s32 0, %v230
    %v232 = vrot.slane %v228, %v231
    %v233 = vmul.f32 %v226, %v232
    %v234 = vmul.f32 %v227, %v232
    %v235 = vld [vmem:[#allocation7 + $0x2] sm:$0x1]
    %v236 = vlaneseq
    %v237 = vshrl.u32 %v236, 7
    %v238 = vsub.s32 0, %v237
    %v239 = vrot.slane %v235, %v238
    %v240 = vadd.f32 %v233, %v239
    %v241 = vadd.f32 %v234, %v239
    %242 = vst.msk [vmem:[#allocation8] sm:$0xff] %vm65, %v240
    %243 = vst.msk [vmem:[#allocation8 + $0x8] sm:$0xff] %vm65, %v241
    // Predicated region
    $region26: #{tpu_custom_call.1} parent=1 // pred_check
      _
    $region27: #{tpu_custom_call.1} parent=1 // pred_check_branch
      %245 = sbr.rel (0) target = $region29
    $region28: #{tpu_custom_call.1} parent=1 // pred_region
      %s247 = ssub.s32 256, 256
      %248 = vsyncadd [#allocation4], %s247
      %s249 = sshll.u32 [#allocation8], 4
      %s250 = int_to_ptr.vmem [resolvable:$true] %s249
      %255 = dma.vmem_to_hbm [thread:$0]  %s250, 256, %s3, [#allocation4], 128, 128, 8
    $region29: #{tpu_custom_call.1} parent=1 // pred_fallthru
      _
    // Predicated region
    $region30: #{tpu_custom_call.1} parent=1 // pred_check
      _
    $region31: #{tpu_custom_call.1} parent=1 // pred_check_branch
      %257 = sbr.rel (0) target = $region33
    $region32: #{tpu_custom_call.1} parent=1 // pred_region
      %258 = dma.done [#allocation4], 256
    $region33: #{tpu_custom_call.1} parent=1 // pred_fallthru
      _
    %259 = vsyncpa [#allocation3], 1
    %260 = vsyncpa [#allocation6], 1
    %261 = vsyncpa [#allocation4], 1

</llo_original>
